<compile_context>
chip_gen: v7x
topology: tpu7x:2x2x1
jax: 0.10.0
libtpu: 0.0.40
codegen_flags: <defaults>
</compile_context>

<pallas_src>
import math
import jax
import jax.numpy as jnp
from jax import lax
from jax.experimental import pallas as pl
from jax.experimental.pallas import tpu as pltpu


def _round_up(v, m):
    return ((v + m - 1) // m) * m


def _cosine_linear_cached_kernel(sigma_ref, x_ref, wn_ref, out_ref, xn_ref):
    """out tile = (sigma * L2norm(x)) @ wn.T, with wn already unit-norm bf16.

    The sigma-scaled, normalized bf16 x tile is cached in `xn_ref` across the
    inner (out_features) grid axis and recomputed only when j == 0.
    Requires grid axis 1 to be "arbitrary" (sequential per batch tile).
    """
    @pl.when(pl.program_id(1) == 0)
    def _():
        x = x_ref[...].astype(jnp.float32)                      # (TM, Dp)
        # F.normalize eps=1e-12: rsqrt(max(sum_sq, eps^2)) == 1 / max(||v||, eps)
        inv_xn = lax.rsqrt(
            jnp.maximum(jnp.sum(x * x, axis=1, keepdims=True), jnp.float32(1e-24)))
        xn_ref[...] = (x * (sigma_ref[0] * inv_xn)).astype(jnp.bfloat16)

    # MXU matmul contracting D on both sides (no in-kernel transpose),
    # bf16 operands, f32 accumulation.
    out_ref[...] = lax.dot_general(
        xn_ref[...], wn_ref[...],
        dimension_numbers=(((1,), (1,)), ((), ())),
        preferred_element_type=jnp.float32,
    ).astype(out_ref.dtype)


def _cosine_linear_fused_kernel(sigma_ref, x_ref, wn_ref, out_ref):
    """Single-pass variant (no scratch) used when the grid is too small for
    x-tile caching to pay off / when both axes should stay "parallel"."""
    x = x_ref[...].astype(jnp.float32)                          # (TM, Dp)
    inv_xn = lax.rsqrt(
        jnp.maximum(jnp.sum(x * x, axis=1, keepdims=True), jnp.float32(1e-24)))
    xn = (x * (sigma_ref[0] * inv_xn)).astype(jnp.bfloat16)
    out_ref[...] = lax.dot_general(
        xn, wn_ref[...],
        dimension_numbers=(((1,), (1,)), ((), ())),
        preferred_element_type=jnp.float32,
    ).astype(out_ref.dtype)


def cosine_linear_forward(x, weight, sigma, *, tm=None, tn=None):
    """x: (B, D) f32, weight: (O, D) f32, sigma: (1,) f32 -> {'logits': (B, O) f32}."""
    B, D = x.shape
    O, D2 = weight.shape
    assert D == D2, "in_features mismatch between x and weight"

    # Lane-align the contraction dim.
    Dp = _round_up(D, 128)

    # Tile sizes: TM large (resident x tile, amortizes re-streaming of W),
    # at least 16 for bf16 sublane packing; TN lane-dense multiple of 128.
    TM = tm if tm is not None else min(512, _round_up(B, 16))
    TN = tn if tn is not None else min(256, _round_up(O, 128))
    TM = max(16, _round_up(TM, 16))
    TN = max(128, _round_up(TN, 128))

    def _db_vmem_bytes(tm_, tn_):
        # double-buffered f32 x tile + bf16 W tile + f32 out tile,
        # plus the single-buffered bf16 xn scratch.
        return 2 * (tm_ * Dp * 4 + tn_ * Dp * 2 + tm_ * tn_ * 4) + tm_ * Dp * 2

    # Keep the double-buffered working set <= ~28 MiB so it fits v7x's 64 MiB
    # physical VMEM with headroom for compiler-internal scratch.
    WORKING_SET = 28 * 1024 * 1024
    while _db_vmem_bytes(TM, TN) > WORKING_SET and TN > 128:
        TN = max(128, _round_up(TN // 2, 128))
    while _db_vmem_bytes(TM, TN) > WORKING_SET and TM > 16:
        TM = max(16, _round_up(TM // 2, 16))
    # TODO(synk): for Dp >= ~4096 add a K grid axis with an f32 accumulator
    # scratch so the tile footprint is bounded independently of D.

    Bp = _round_up(B, TM)
    Op = _round_up(O, TN)

    # Pre-normalize W once outside the kernel and store bf16: halves streamed
    # HBM bytes and removes all per-step W normalization work in the kernel.
    w32 = weight.astype(jnp.float32)
    inv_wn = lax.rsqrt(
        jnp.maximum(jnp.sum(w32 * w32, axis=1, keepdims=True), jnp.float32(1e-24)))
    wn = (w32 * inv_wn).astype(jnp.bfloat16)

    # Zero-pad to lane-dense, tile-divisible shapes (zero rows normalize to
    # zero, padded output columns are sliced off -> numerically inert).
    xp = x if (Bp == B and Dp == D) else jnp.pad(x, ((0, Bp - B), (0, Dp - D)))
    wnp = wn if (Op == O and Dp == D) else jnp.pad(wn, ((0, Op - O), (0, Dp - D)))
    sigma = jnp.asarray(sigma, dtype=jnp.float32).reshape((1,))

    grid = (Bp // TM, Op // TN)

    # Cache the normalized x tile across the inner axis only when there are at
    # least 2 batch tiles (so v7x can still shard the "parallel" batch axis
    # across its 2 TensorCores) and at least 2 output tiles (otherwise the
    # cache saves nothing).
    use_cache = grid[0] >= 2 and grid[1] >= 2

    if use_cache:
        kernel = _cosine_linear_cached_kernel
        scratch_shapes = [pltpu.VMEM((TM, Dp), jnp.bfloat16)]
        dim_sem = ("parallel", "arbitrary")
        n_trans = Bp
    else:
        kernel = _cosine_linear_fused_kernel
        scratch_shapes = []
        dim_sem = ("parallel", "parallel")
        n_trans = Bp * grid[1]

    cost = pl.CostEstimate(
        flops=2 * Bp * Op * Dp + 3 * Bp * Dp,
        transcendentals=n_trans,
        bytes_accessed=Bp * Dp * 4 + grid[0] * Op * Dp * 2 + Bp * Op * 4,
    )

    vmem_limit = int(min(48 * 1024 * 1024,
                         max(_db_vmem_bytes(TM, TN) + 8 * 1024 * 1024,
                             16 * 1024 * 1024)))

    # TODO(synk): when B >> O, swap resident/streamed roles (W resident, x
    # streamed, grid order swapped) to minimize HBM re-fetch of the larger matrix.
    # TODO(synk): if the streamed W DMA is exposed (tiny TM or Dp), consider
    # pipeline_mode=pl.Buffered(3) on the W BlockSpec.
    logits_padded = pl.pallas_call(
        kernel,
        out_shape=jax.ShapeDtypeStruct((Bp, Op), jnp.float32),
        grid=grid,
        in_specs=[
            pl.BlockSpec(memory_space=pltpu.SMEM),           # sigma (scalar)
            pl.BlockSpec((TM, Dp), lambda i, j: (i, 0)),     # x tile (resident over j)
            pl.BlockSpec((TN, Dp), lambda i, j: (j, 0)),     # unit-norm bf16 W tile
        ],
        out_specs=pl.BlockSpec((TM, TN), lambda i, j: (i, j)),
        scratch_shapes=scratch_shapes,
        compiler_params=pltpu.CompilerParams(
            dimension_semantics=dim_sem,
            vmem_limit_bytes=vmem_limit,
        ),
        cost_estimate=cost,
    )(sigma, xp, wnp)

    # Slice off padding.
    return {"logits": logits_padded[:B, :O]}


def init_cosine_linear_params(key, in_features, out_features):
    """Matches reset_parameters(): W ~ U(-stdv, stdv), sigma = 1."""
    stdv = 1.0 / math.sqrt(in_features)
    weight = jax.random.uniform(
        key, (out_features, in_features), dtype=jnp.float32,
        minval=-stdv, maxval=stdv)
    sigma = jnp.ones((1,), dtype=jnp.float32)
    return weight, sigma


def _reference(x, weight, sigma):
    # Pure-JAX f32 reference of the PyTorch forward (use_RP=False path).
    eps = 1e-12
    xn = x / jnp.maximum(jnp.linalg.norm(x, axis=1, keepdims=True), eps)
    wn = weight / jnp.maximum(jnp.linalg.norm(weight, axis=1, keepdims=True), eps)
    return sigma[0] * (xn @ wn.T)


if __name__ == "__main__":
    key = jax.random.PRNGKey(0)
    k_x, k_w, k_x2, k_w2 = jax.random.split(key, 4)

    # 1) Small module-sized shape: fused path, 1x1 grid, padding on every axis.
    batch, in_features, out_features = 8, 32, 16
    x = jax.random.normal(k_x, (batch, in_features), dtype=jnp.float32)
    weight, sigma = init_cosine_linear_params(k_w, in_features, out_features)

    out = cosine_linear_forward(x, weight, sigma)
    logits = jax.block_until_ready(out["logits"])
    ref = _reference(x, weight, sigma)
    assert logits.shape == (batch, out_features)
    # bf16 MXU operands -> ~1e-3 level error on unit-norm cosine logits
    assert jnp.allclose(logits, ref, atol=2e-2, rtol=2e-2), "mismatch vs reference (small)"

    # 2) Multi-tile shape: cached-xn path, 3x3 grid, non-trivial sigma.
    B2, D2, O2 = 272, 200, 384
    x2 = jax.random.normal(k_x2, (B2, D2), dtype=jnp.float32)
    w2, s2 = init_cosine_linear_params(k_w2, D2, O2)
    s2 = s2 * 1.5
    out2 = cosine_linear_forward(x2, w2, s2, tm=128, tn=128)
    logits2 = jax.block_until_ready(out2["logits"])
    ref2 = _reference(x2, w2, s2)
    assert logits2.shape == (B2, O2)
    assert jnp.allclose(logits2, ref2, atol=3e-2, rtol=3e-2), "mismatch vs reference (tiled)"

    # TODO(synk): the use_RP / W_rand branch (ReLU(x @ W_rand) @ W.T) is not
    # part of the default module state (use_RP=False, W_rand=None); only the
    # cosine path is implemented here.
    print("KERNEL_OK")
</pallas_src>

<mosaic_0001>
module attributes {stable_mosaic.version = 11 : i64} {
  func.func @_cosine_linear_fused_kernel(%arg0: i32, %arg1: i32, %arg2: memref<1xf32, #tpu.memory_space<smem>>, %arg3: memref<16x128xf32, #tpu.memory_space<vmem>>, %arg4: memref<128x128xbf16, #tpu.memory_space<vmem>>, %arg5: memref<16x128xf32, #tpu.memory_space<vmem>>) attributes {dimension_semantics = [#tpu.dimension_semantics<parallel>, #tpu.dimension_semantics<parallel>], iteration_bounds = array<i64: 1, 1>, scalar_prefetch = 0 : i64, scratch_operands = 0 : i64, tpu.core_type = #tpu.core_type<tc>, window_params = [{transform_indices = @transform_0, window_bounds = array<i64: 1>}, {transform_indices = @transform_1, window_bounds = array<i64: 16, 128>}, {transform_indices = @transform_2, window_bounds = array<i64: 128, 128>}, {transform_indices = @transform_3, window_bounds = array<i64: 16, 128>}]} {
    %c0 = arith.constant 0 : index
    %c0_0 = arith.constant 0 : index
    %0 = vector.load %arg3[%c0, %c0_0] : memref<16x128xf32, #tpu.memory_space<vmem>>, vector<16x128xf32>
    %1 = arith.mulf %0, %0 : vector<16x128xf32>
    %cst = arith.constant dense<0.000000e+00> : vector<16xf32>
    %2 = vector.multi_reduction <add>, %1, %cst [1] : vector<16x128xf32> to vector<16xf32>
    %3 = vector.shape_cast %2 : vector<16xf32> to vector<16x1xf32>
    %cst_1 = arith.constant 1.000000e-24 : f32
    %4 = vector.broadcast %cst_1 : f32 to vector<16x1xf32>
    %5 = arith.maximumf %3, %4 : vector<16x1xf32>
    %6 = math.rsqrt %5 : vector<16x1xf32>
    %c0_2 = arith.constant 0 : index
    %7 = memref.load %arg2[%c0_2] : memref<1xf32, #tpu.memory_space<smem>>
    %8 = vector.broadcast %7 : f32 to vector<16x1xf32>
    %9 = arith.mulf %8, %6 : vector<16x1xf32>
    %10 = vector.broadcast %9 : vector<16x1xf32> to vector<16x128xf32>
    %11 = arith.mulf %0, %10 : vector<16x128xf32>
    %12 = arith.truncf %11 : vector<16x128xf32> to vector<16x128xbf16>
    %c0_3 = arith.constant 0 : index
    %c0_4 = arith.constant 0 : index
    %13 = vector.load %arg4[%c0_3, %c0_4] : memref<128x128xbf16, #tpu.memory_space<vmem>>, vector<128x128xbf16>
    %cst_5 = arith.constant dense<0.000000e+00> : vector<16x128xf32>
    %14 = tpu.matmul %12, %13, %cst_5 {dimension_numbers = #tpu.dot_dimension_numbers<[1], [1], [0], [0], [0, 0, 1, 0], [], []>} : vector<16x128xbf16>, vector<128x128xbf16>, vector<16x128xf32> -> vector<16x128xf32>
    %c0_6 = arith.constant 0 : index
    %c0_7 = arith.constant 0 : index
    %15 = vector.load %arg5[%c0_6, %c0_7] : memref<16x128xf32, #tpu.memory_space<vmem>>, vector<16x128xf32>
    tpu.vector_store %arg5[%c0_6, %c0_7], %14 {strides = array<i32>} : memref<16x128xf32, #tpu.memory_space<vmem>>, vector<16x128xf32>,
    return
  }
  func.func @transform_0(%arg0: i32, %arg1: i32) -> i32 {
    %c0_i32 = arith.constant 0 : i32
    %c0_i32_0 = arith.constant 0 : i32
    return %c0_i32 : i32
  }
  func.func @transform_1(%arg0: i32, %arg1: i32) -> (i32, i32) {
    %c0_i32 = arith.constant 0 : i32
    %c0_i32_0 = arith.constant 0 : i32
    return %arg0, %c0_i32 : i32, i32
  }
  func.func @transform_2(%arg0: i32, %arg1: i32) -> (i32, i32) {
    %c0_i32 = arith.constant 0 : i32
    %c0_i32_0 = arith.constant 0 : i32
    return %arg1, %c0_i32 : i32, i32
  }
  func.func @transform_3(%arg0: i32, %arg1: i32) -> (i32, i32) {
    %c0_i32 = arith.constant 0 : i32
    return %arg0, %arg1 : i32, i32
  }
}

</mosaic_0001>

<llo_original>
// kernel: tpu_custom_call.1
$region0: #{tpu_custom_call.1}
  #allocation0 [shape = 'u32[]', space=smem, size = 0x4, offset = 0x4, fixed_abs, tag = 'smem constant byte address 0x4 - core index']
  #allocation1 [shape = 'u32[144,128]{1,0:T(1,128)}', space=vmem, size = 0x12000, scoped, tag = 'internal scratch']
  #allocation2 [shape = 'f32[1]{0:T(128)S(6)}', space=smem, size = 0x200, scoped, tag = 'scoped memory for tpu_custom_call.1']
  %s0 = inlined_call_operand.<no memory space> [shape: f32[1], index: 0, kind: input, shape index: {}]
  %s1 = inlined_call_operand.hbm [shape: f32[16,128], index: 1, kind: input, shape index: {}]
  %s2 = inlined_call_operand.hbm [shape: bf16[128,128], index: 2, kind: input, shape index: {}]
  %s3 = inlined_call_operand.hbm [shape: f32[16,128], index: 3, kind: output, shape index: {}]
  %s4 = sld [smem:[#allocation0]]
  $region30: #{tpu_custom_call.1} parent=0
    _
  %s6 = ssub.s32 1, %s4
  %s7 = scalar_select 0, %s6, %s4
  %8 = sst [smem:[#allocation2]] %s0
  $region1: #{tpu_custom_call.1} parent=0
    #allocation3 [shape = 'u8[8192]{0}', space=vmem, size = 0x2000, scoped, tag = 'input window, operand 1, single buffered']
    #allocation4 [shape = 's32[1]{0}', space=sflag, size = 0x4, scoped, tag = 'scoped memory for tpu_custom_call.1']
    #allocation5 [shape = 's32[1]{0}', space=sflag, size = 0x4, scoped, tag = 'scoped memory for tpu_custom_call.1']
    #allocation6 [shape = 'u8[32768]{0}', space=vmem, size = 0x8000, scoped, tag = 'input window, operand 2, single buffered']
    #allocation7 [shape = 's32[1]{0}', space=sflag, size = 0x4, scoped, tag = 'scoped memory for tpu_custom_call.1']
    #allocation8 [shape = 'u8[8192]{0}', space=vmem, size = 0x2000, scoped, tag = 'output window, operand 0, single buffered']
    %9 = vsyncpa [#allocation4], 0
    %10 = vsyncpa [#allocation7], 0
    %11 = vsyncpa [#allocation5], 0
    // Predicated region
    $region2: #{tpu_custom_call.1} parent=1 // pred_check
      _
    $region3: #{tpu_custom_call.1} parent=1 // pred_check_branch
      %13 = sbr.rel (0) target = $region5
    $region4: #{tpu_custom_call.1} parent=1 // pred_region
      _
    $region5: #{tpu_custom_call.1} parent=1 // pred_fallthru
      _
    // Predicated region
    $region6: #{tpu_custom_call.1} parent=1 // pred_check
      _
    $region7: #{tpu_custom_call.1} parent=1 // pred_check_branch
      %15 = sbr.rel (0) target = $region9
    $region8: #{tpu_custom_call.1} parent=1 // pred_region
      %s17 = ssub.s32 256, 256
      %18 = vsyncadd [#allocation4], %s17
      %s19 = sshll.u32 [#allocation3], 4
      %s20 = int_to_ptr.vmem [resolvable:$true] %s19
      %25 = dma.hbm_to_vmem [thread:$0]  %s1, 256, %s20, [#allocation4], 128, 128, 8
    $region9: #{tpu_custom_call.1} parent=1 // pred_fallthru
      _
    // Predicated region
    $region10: #{tpu_custom_call.1} parent=1 // pred_check
      _
    $region11: #{tpu_custom_call.1} parent=1 // pred_check_branch
      %27 = sbr.rel (0) target = $region13
    $region12: #{tpu_custom_call.1} parent=1 // pred_region
      %s29 = ssub.s32 1024, 1024
      %30 = vsyncadd [#allocation7], %s29
      %s31 = sshll.u32 [#allocation6], 4
      %s32 = int_to_ptr.vmem [resolvable:$true] %s31
      %37 = dma.hbm_to_vmem [thread:$0]  %s2, 1024, %s32, [#allocation7], 64, 64, 4
    $region13: #{tpu_custom_call.1} parent=1 // pred_fallthru
      _
    // Predicated region
    $region14: #{tpu_custom_call.1} parent=1 // pred_check
      _
    $region15: #{tpu_custom_call.1} parent=1 // pred_check_branch
      %39 = sbr.rel (0) target = $region17
    $region16: #{tpu_custom_call.1} parent=1 // pred_region
      %40 = dma.done [#allocation4], 256
    $region17: #{tpu_custom_call.1} parent=1 // pred_fallthru
      _
    // Predicated region
    $region18: #{tpu_custom_call.1} parent=1 // pred_check
      _
    $region19: #{tpu_custom_call.1} parent=1 // pred_check_branch
      %42 = sbr.rel (0) target = $region21
    $region20: #{tpu_custom_call.1} parent=1 // pred_region
      %43 = dma.done [#allocation7], 1024
    $region21: #{tpu_custom_call.1} parent=1 // pred_fallthru
      _
    %v45 = vld [vmem:[#allocation3] sm:$0xff]
    %v46 = vld [vmem:[#allocation3 + $0x8] sm:$0xff]
    %v47 = vmul.f32 %v45, %v45
    %v48 = vmul.f32 %v46, %v46
    %49 = vadd.xlane.f32.xlu0 %v47
    %v50 = vpop.xlane.xlu0 %49
    %51 = vadd.xlane.f32.xlu0 %v48
    %v52 = vpop.xlane.xlu0 %51
    %v53 = vmax.f32 %v50, 1e-24
    %v54 = vmax.f32 %v52, 1e-24
    %v55 = vrsqrt.pop %v53
    %v56 = vrsqrt.pop %v54
    %s57 = sld [smem:[#allocation2]]
    %v58 = vstv %s57
    %v59 = vmul.f32 %v58, %v55
    %v60 = vmul.f32 %v58, %v56
    %v61 = vmul.f32 %v45, %v59
    %v62 = vmul.f32 %v46, %v60
    %v63 = vpack.c.bf16 %v62, %v61
    %v64 = vld [vmem:[#allocation6] sm:$0xf]
    %v65 = vld [vmem:[#allocation6 + $0x4] sm:$0xf]
    %v66 = vld [vmem:[#allocation6 + $0x8] sm:$0xf]
    %v67 = vld [vmem:[#allocation6 + $0xc] sm:$0xf]
    %v68 = vld [vmem:[#allocation6 + $0x10] sm:$0xf]
    %v69 = vld [vmem:[#allocation6 + $0x14] sm:$0xf]
    %v70 = vld [vmem:[#allocation6 + $0x18] sm:$0xf]
    %v71 = vld [vmem:[#allocation6 + $0x1c] sm:$0xf]
    %v72 = vld [vmem:[#allocation6 + $0x20] sm:$0xf]
    %v73 = vld [vmem:[#allocation6 + $0x24] sm:$0xf]
    %v74 = vld [vmem:[#allocation6 + $0x28] sm:$0xf]
    %v75 = vld [vmem:[#allocation6 + $0x2c] sm:$0xf]
    %v76 = vld [vmem:[#allocation6 + $0x30] sm:$0xf]
    %v77 = vld [vmem:[#allocation6 + $0x34] sm:$0xf]
    %v78 = vld [vmem:[#allocation6 + $0x38] sm:$0xf]
    %v79 = vld [vmem:[#allocation6 + $0x3c] sm:$0xf]
    %v96 = vunpack.c.l.b16 %v64
    %v97 = vunpack.c.l.b16 %v65
    %v98 = vunpack.c.l.b16 %v66
    %v99 = vunpack.c.l.b16 %v67
    %v100 = vunpack.c.l.b16 %v68
    %v101 = vunpack.c.l.b16 %v69
    %v102 = vunpack.c.l.b16 %v70
    %v103 = vunpack.c.l.b16 %v71
    %v104 = vunpack.c.l.b16 %v72
    %v105 = vunpack.c.l.b16 %v73
    %v106 = vunpack.c.l.b16 %v74
    %v107 = vunpack.c.l.b16 %v75
    %v108 = vunpack.c.l.b16 %v76
    %v109 = vunpack.c.l.b16 %v77
    %v110 = vunpack.c.l.b16 %v78
    %v111 = vunpack.c.l.b16 %v79
    %v112 = vpack.c.b16 %v97, %v96
    %v113 = vpack.c.b16 %v99, %v98
    %v114 = vpack.c.b16 %v101, %v100
    %v115 = vpack.c.b16 %v103, %v102
    %v116 = vpack.c.b16 %v105, %v104
    %v117 = vpack.c.b16 %v107, %v106
    %v118 = vpack.c.b16 %v109, %v108
    %v119 = vpack.c.b16 %v111, %v110
    %128 = vmatprep.subr.bf16.mxu0 0
    %129 = vmatpush1.bf16.xpose.msra.mxu0 %v112
    %130 = vmatprep.subr.bf16.mxu0 0
    %131 = vmatpush1.bf16.xpose.msra.mxu0 %v113
    %132 = vmatprep.subr.bf16.mxu0 0
    %133 = vmatpush1.bf16.xpose.msra.mxu0 %v114
    %134 = vmatprep.subr.bf16.mxu0 0
    %135 = vmatpush1.bf16.xpose.msra.mxu0 %v115
    %136 = vmatprep.subr.bf16.mxu0 0
    %137 = vmatpush1.bf16.xpose.msra.mxu0 %v116
    %138 = vmatprep.subr.bf16.mxu0 0
    %139 = vmatpush1.bf16.xpose.msra.mxu0 %v117
    %140 = vmatprep.subr.bf16.mxu0 0
    %141 = vmatpush1.bf16.xpose.msra.mxu0 %v118
    %142 = vmatprep.subr.bf16.mxu0 0
    %143 = vmatpush1.bf16.xpose.msra.mxu0 %v119
    %144 = vmatprep.subr.bf16.mxu0 0
    %145 = vmatpush1.bf16.xpose.msra.mxu0 0
    %146 = vmatprep.subr.bf16.mxu0 0
    %147 = vmatpush1.bf16.xpose.msra.mxu0 0
    %148 = vmatprep.subr.bf16.mxu0 0
    %149 = vmatpush1.bf16.xpose.msra.mxu0 0
    %150 = vmatprep.subr.bf16.mxu0 0
    %151 = vmatpush1.bf16.xpose.msra.mxu0 0
    %152 = vmatprep.subr.bf16.mxu0 0
    %153 = vmatpush1.bf16.xpose.msra.mxu0 0
    %154 = vmatprep.subr.bf16.mxu0 0
    %155 = vmatpush1.bf16.xpose.msra.mxu0 0
    %156 = vmatprep.subr.bf16.mxu0 0
    %157 = vmatpush1.bf16.xpose.msra.mxu0 0
    %158 = vmatprep.subr.bf16.mxu0 0
    %159 = vmatpush1.bf16.xpose.msra.mxu0 0
    %160 = vmatprep.mubr.bf16.mxu0 0
    %161 = vmatmul.mubr.bf16.gmra.mrb[0].mxu0 %v63
    %v162 = vpop.f32.mrb[0].mxu0
    %v163 = vadd.f32 0.0, %v162
    %v164 = vpop.f32.mrb[0].mxu0
    %v165 = vpop.f32.mrb[0].mxu0
    %v166 = vadd.f32 0.0, %v165
    %v167 = vpop.f32.mrb[0].mxu0
    %168 = vdwg.mxu0
    %169 = vst [vmem:[#allocation8] sm:$0xff] %v163
    %170 = vst [vmem:[#allocation8 + $0x8] sm:$0xff] %v166
    // Predicated region
    $region22: #{tpu_custom_call.1} parent=1 // pred_check
      _
    $region23: #{tpu_custom_call.1} parent=1 // pred_check_branch
      %172 = sbr.rel (0) target = $region25
    $region24: #{tpu_custom_call.1} parent=1 // pred_region
      %s174 = ssub.s32 256, 256
      %175 = vsyncadd [#allocation5], %s174
      %s176 = sshll.u32 [#allocation8], 4
      %s177 = int_to_ptr.vmem [resolvable:$true] %s176
      %182 = dma.vmem_to_hbm [thread:$0]  %s177, 256, %s3, [#allocation5], 128, 128, 8
    $region25: #{tpu_custom_call.1} parent=1 // pred_fallthru
      _
    // Predicated region
    $region26: #{tpu_custom_call.1} parent=1 // pred_check
      _
    $region27: #{tpu_custom_call.1} parent=1 // pred_check_branch
      %184 = sbr.rel (0) target = $region29
    $region28: #{tpu_custom_call.1} parent=1 // pred_region
      %185 = dma.done [#allocation5], 256
    $region29: #{tpu_custom_call.1} parent=1 // pred_fallthru
      _
    %186 = vsyncpa [#allocation4], 1
    %187 = vsyncpa [#allocation7], 1
    %188 = vsyncpa [#allocation5], 1

</llo_original>
